<compile_context>
chip_gen: v5e
topology: v5e:2x2
jax: 0.10.0
libtpu: 0.0.40
codegen_flags: <defaults>
</compile_context>

<pallas_src>
import jax
import jax.numpy as jnp
from jax import lax
from jax.experimental import pallas as pl
from jax.experimental.pallas import tpu as pltpu

IN_FEATURES = 32 * 32 * 3   # 3072 (lane-dense: multiple of 128)
HIDDEN = 64                 # layerSize
OUT_FEATURES = 10
OUT_PAD = 128               # pad the 10-wide output to a full lane width


def _round_up(a, m):
    return (a + m - 1) // m * m


def mlp_kernel(x_ref, w1t_ref, w2_ref, bias_ref, o_ref):
    x = x_ref[...]                      # (TB, 3072) bf16
    w1t = w1t_ref[...]                  # (64, 3072) bf16  (PyTorch (out,in) layout)

    # layer1: contract on the lane-dense 3072 axis -> (TB, 64) f32 on the MXU
    h = lax.dot_general(
        x, w1t,
        dimension_numbers=(((1,), (1,)), ((), ())),
        preferred_element_type=jnp.float32,
    )

    bias = bias_ref[...]                # (2, 128) f32; row 0 = b1 (first 64), row 1 = b2 (first 10)
    h = h + bias[0:1, :HIDDEN]

    # relu(hardswish(h)) == where(h > 0, h * min(h + 3, 6) / 6, 0)   (fused)
    a = jnp.where(h > 0.0, h * jnp.minimum(h + 3.0, 6.0) * (1.0 / 6.0), 0.0)

    # layer2 on the 128-lane padded weight (padded columns are zero)
    o = jnp.dot(a, w2_ref[...], preferred_element_type=jnp.float32)   # (TB, 128)
    o = o + bias[1:2, :]
    o_ref[...] = o.astype(o_ref.dtype)


def mlp_forward(x_img, w1, b1, w2, b2, *, tb_max=512):
    """w1: (HIDDEN, IN_FEATURES), b1: (HIDDEN,), w2: (OUT_FEATURES, HIDDEN), b2: (OUT_FEATURES,)
    (same (out, in) layout as torch.nn.Linear.weight)."""
    B = x_img.shape[0]

    # glue: NCHW flatten like torch.flatten(x, 1); bf16 operands for the MXU
    x = x_img.reshape(B, -1).astype(jnp.bfloat16)          # (B, 3072)

    TB = min(tb_max, _round_up(B, 8))                      # batch tile (<=512: safe for v7x VMEM)
    B_pad = _round_up(B, TB)
    if B_pad != B:
        x = jnp.pad(x, ((0, B_pad - B), (0, 0)))

    w1t = w1.astype(jnp.bfloat16)                          # (64, 3072) lane-dense, bf16
    w2p = jnp.zeros((HIDDEN, OUT_PAD), jnp.float32).at[:, :OUT_FEATURES].set(w2.T)
    bias = (jnp.zeros((2, OUT_PAD), jnp.float32)
            .at[0, :HIDDEN].set(b1)
            .at[1, :OUT_FEATURES].set(b2))

    out = pl.pallas_call(
        mlp_kernel,
        out_shape=jax.ShapeDtypeStruct((B_pad, OUT_PAD), jnp.float32),
        grid_spec=pltpu.PrefetchScalarGridSpec(
            num_scalar_prefetch=0,
            grid=(B_pad // TB,),
            in_specs=[
                pl.BlockSpec((TB, IN_FEATURES), lambda i: (i, 0)),        # x tile (pipelined)
                pl.BlockSpec((HIDDEN, IN_FEATURES), lambda i: (0, 0)),    # w1t resident
                pl.BlockSpec((HIDDEN, OUT_PAD), lambda i: (0, 0)),        # w2 (padded) resident
                pl.BlockSpec((2, OUT_PAD), lambda i: (0, 0)),             # packed biases
            ],
            out_specs=pl.BlockSpec((TB, OUT_PAD), lambda i: (i, 0)),
        ),
        compiler_params=pltpu.CompilerParams(
            dimension_semantics=("parallel",)),            # shard batch tiles across TCs (v7x)
    )(x, w1t, w2p, bias)

    return out[:B, :OUT_FEATURES]


def init_params(key):
    # Deterministic init mimicking nn.Linear: U(-1/sqrt(fan_in), 1/sqrt(fan_in)),
    # weights stored in PyTorch (out_features, in_features) layout.
    k1, k2, k3, k4 = jax.random.split(key, 4)
    lim1 = 1.0 / jnp.sqrt(IN_FEATURES)
    lim2 = 1.0 / jnp.sqrt(HIDDEN)
    w1 = jax.random.uniform(k1, (HIDDEN, IN_FEATURES), jnp.float32, -lim1, lim1)
    b1 = jax.random.uniform(k2, (HIDDEN,), jnp.float32, -lim1, lim1)
    w2 = jax.random.uniform(k3, (OUT_FEATURES, HIDDEN), jnp.float32, -lim2, lim2)
    b2 = jax.random.uniform(k4, (OUT_FEATURES,), jnp.float32, -lim2, lim2)
    return w1, b1, w2, b2


if __name__ == "__main__":
    key = jax.random.PRNGKey(0)
    kx, kp = jax.random.split(key)

    B = 8
    x_img = jax.random.normal(kx, (B, 3, 32, 32), jnp.float32)   # NCHW like PyTorch
    w1, b1, w2, b2 = init_params(kp)

    out = mlp_forward(x_img, w1, b1, w2, b2)
    out = jax.block_until_ready(out)
    assert out.shape == (B, OUT_FEATURES)

    # dtype-matched reference (bf16 operands into layer1, f32 accumulation)
    xf = x_img.reshape(B, -1)
    pre = jnp.dot(xf.astype(jnp.bfloat16), w1.astype(jnp.bfloat16).T,
                  preferred_element_type=jnp.float32) + b1
    hsw = pre * jnp.clip(pre + 3.0, 0.0, 6.0) * (1.0 / 6.0)
    ref = jnp.dot(jnp.maximum(hsw, 0.0), w2.T, preferred_element_type=jnp.float32) + b2
    assert jnp.allclose(out, ref, atol=2e-3, rtol=2e-3), float(jnp.max(jnp.abs(out - ref)))

    # loose sanity check against the pure-f32 math of the PyTorch module
    pre32 = xf @ w1.T + b1
    hsw32 = pre32 * jnp.clip(pre32 + 3.0, 0.0, 6.0) * (1.0 / 6.0)
    ref32 = jnp.maximum(hsw32, 0.0) @ w2.T + b2
    assert jnp.allclose(out, ref32, atol=5e-2, rtol=5e-2)

    print("KERNEL_OK")
</pallas_src>

<mosaic_0001>
module attributes {stable_mosaic.version = 11 : i64} {
  func.func @mlp_kernel(%arg0: i32, %arg1: memref<8x3072xbf16, #tpu.memory_space<vmem>>, %arg2: memref<64x3072xbf16, #tpu.memory_space<vmem>>, %arg3: memref<64x128xf32, #tpu.memory_space<vmem>>, %arg4: memref<2x128xf32, #tpu.memory_space<vmem>>, %arg5: memref<8x128xf32, #tpu.memory_space<vmem>>) attributes {dimension_semantics = [#tpu.dimension_semantics<parallel>], iteration_bounds = array<i64: 1>, scalar_prefetch = 0 : i64, scratch_operands = 0 : i64, tpu.core_type = #tpu.core_type<tc>, window_params = [{transform_indices = @transform_0, window_bounds = array<i64: 8, 3072>}, {pipeline_mode = #tpu.pipeline_mode<synchronous>, transform_indices = @transform_1, window_bounds = array<i64: 64, 3072>}, {pipeline_mode = #tpu.pipeline_mode<synchronous>, transform_indices = @transform_2, window_bounds = array<i64: 64, 128>}, {pipeline_mode = #tpu.pipeline_mode<synchronous>, transform_indices = @transform_3, window_bounds = array<i64: 2, 128>}, {transform_indices = @transform_4, window_bounds = array<i64: 8, 128>}]} {
    %c0 = arith.constant 0 : index
    %c0_0 = arith.constant 0 : index
    %0 = vector.load %arg1[%c0, %c0_0] : memref<8x3072xbf16, #tpu.memory_space<vmem>>, vector<8x3072xbf16>
    %c0_1 = arith.constant 0 : index
    %c0_2 = arith.constant 0 : index
    %1 = vector.load %arg2[%c0_1, %c0_2] : memref<64x3072xbf16, #tpu.memory_space<vmem>>, vector<64x3072xbf16>
    %cst = arith.constant dense<0.000000e+00> : vector<8x64xf32>
    %2 = tpu.matmul %0, %1, %cst {dimension_numbers = #tpu.dot_dimension_numbers<[1], [1], [0], [0], [0, 0, 1, 0], [], []>} : vector<8x3072xbf16>, vector<64x3072xbf16>, vector<8x64xf32> -> vector<8x64xf32>
    %c0_3 = arith.constant 0 : index
    %c0_4 = arith.constant 0 : index
    %3 = vector.load %arg4[%c0_3, %c0_4] : memref<2x128xf32, #tpu.memory_space<vmem>>, vector<2x128xf32>
    %4 = vector.extract_strided_slice %3 {offsets = [0, 0], sizes = [1, 64], strides = [1, 1]} : vector<2x128xf32> to vector<1x64xf32>
    %5 = vector.broadcast %4 : vector<1x64xf32> to vector<8x64xf32>
    %6 = arith.addf %2, %5 : vector<8x64xf32>
    %cst_5 = arith.constant 0.000000e+00 : f32
    %7 = vector.broadcast %cst_5 : f32 to vector<8x64xf32>
    %8 = arith.cmpf ogt, %6, %7 : vector<8x64xf32>
    %cst_6 = arith.constant 3.000000e+00 : f32
    %9 = vector.broadcast %cst_6 : f32 to vector<8x64xf32>
    %10 = arith.addf %6, %9 : vector<8x64xf32>
    %cst_7 = arith.constant 6.000000e+00 : f32
    %11 = vector.broadcast %cst_7 : f32 to vector<8x64xf32>
    %12 = arith.minimumf %10, %11 : vector<8x64xf32>
    %13 = arith.mulf %6, %12 : vector<8x64xf32>
    %cst_8 = arith.constant 0.166666672 : f32
    %14 = vector.broadcast %cst_8 : f32 to vector<8x64xf32>
    %15 = arith.mulf %13, %14 : vector<8x64xf32>
    %cst_9 = arith.constant 0.000000e+00 : f32
    %16 = vector.broadcast %cst_9 : f32 to vector<8x64xf32>
    %17 = arith.select %8, %15, %16 : vector<8x64xi1>, vector<8x64xf32>
    %c0_10 = arith.constant 0 : index
    %c0_11 = arith.constant 0 : index
    %18 = vector.load %arg3[%c0_10, %c0_11] : memref<64x128xf32, #tpu.memory_space<vmem>>, vector<64x128xf32>
    %cst_12 = arith.constant dense<0.000000e+00> : vector<8x128xf32>
    %19 = tpu.matmul %17, %18, %cst_12 {dimension_numbers = #tpu.dot_dimension_numbers<[1], [0], [0], [1], [0, 0, 1, 1], [], []>} : vector<8x64xf32>, vector<64x128xf32>, vector<8x128xf32> -> vector<8x128xf32>
    %20 = vector.extract_strided_slice %3 {offsets = [1, 0], sizes = [1, 128], strides = [1, 1]} : vector<2x128xf32> to vector<1x128xf32>
    %21 = vector.broadcast %20 : vector<1x128xf32> to vector<8x128xf32>
    %22 = arith.addf %19, %21 : vector<8x128xf32>
    %c0_13 = arith.constant 0 : index
    %c0_14 = arith.constant 0 : index
    %23 = vector.load %arg5[%c0_13, %c0_14] : memref<8x128xf32, #tpu.memory_space<vmem>>, vector<8x128xf32>
    tpu.vector_store %arg5[%c0_13, %c0_14], %22 {strides = array<i32>} : memref<8x128xf32, #tpu.memory_space<vmem>>, vector<8x128xf32>,
    return
  }
  func.func @transform_0(%arg0: i32) -> (i32, i32) {
    %c0_i32 = arith.constant 0 : i32
    %c0_i32_0 = arith.constant 0 : i32
    return %arg0, %c0_i32 : i32, i32
  }
  func.func @transform_1(%arg0: i32) -> (i32, i32) {
    %c0_i32 = arith.constant 0 : i32
    %c0_i32_0 = arith.constant 0 : i32
    %c0_i32_1 = arith.constant 0 : i32
    return %c0_i32, %c0_i32_0 : i32, i32
  }
  func.func @transform_2(%arg0: i32) -> (i32, i32) {
    %c0_i32 = arith.constant 0 : i32
    %c0_i32_0 = arith.constant 0 : i32
    %c0_i32_1 = arith.constant 0 : i32
    return %c0_i32, %c0_i32_0 : i32, i32
  }
  func.func @transform_3(%arg0: i32) -> (i32, i32) {
    %c0_i32 = arith.constant 0 : i32
    %c0_i32_0 = arith.constant 0 : i32
    %c0_i32_1 = arith.constant 0 : i32
    return %c0_i32, %c0_i32_0 : i32, i32
  }
  func.func @transform_4(%arg0: i32) -> (i32, i32) {
    %c0_i32 = arith.constant 0 : i32
    %c0_i32_0 = arith.constant 0 : i32
    return %arg0, %c0_i32 : i32, i32
  }
}

</mosaic_0001>

<llo_original>
// kernel: tpu_custom_call.1
$region0: #{tpu_custom_call.1}
  #allocation0 [shape = 'u32[]', space=smem, size = 0x4, offset = 0x4, fixed_abs, tag = 'smem constant byte address 0x4 - core index']
  #allocation1 [shape = 'u32[72,128]{1,0:T(1,128)}', space=vmem, size = 0x9000, scoped, tag = 'internal scratch']
  %s0 = inlined_call_operand.hbm [shape: bf16[8,3072], index: 0, kind: input, shape index: {}]
  %s1 = inlined_call_operand.hbm [shape: bf16[64,3072], index: 1, kind: input, shape index: {}]
  %s2 = inlined_call_operand.hbm [shape: f32[64,128], index: 2, kind: input, shape index: {}]
  %s3 = inlined_call_operand.vmem [shape: f32[2,128], index: 3, kind: input, shape index: {}]
  %s4 = inlined_call_operand.hbm [shape: f32[8,128], index: 4, kind: output, shape index: {}]
  %s5 = sld [smem:[#allocation0]]
  $region38: #{tpu_custom_call.1} parent=0
    _
  %s7 = ssub.s32 1, %s5
  %s8 = scalar_select 0, %s7, %s5
  $region1: #{tpu_custom_call.1} parent=0
    #allocation2 [shape = 'u8[49152]{0}', space=vmem, size = 0xc000, scoped, tag = 'input window, operand 0, single buffered']
    #allocation3 [shape = 's32[1]{0}', space=sflag, size = 0x4, scoped, tag = 'scoped memory for tpu_custom_call.1']
    #allocation4 [shape = 's32[1]{0}', space=sflag, size = 0x4, scoped, tag = 'scoped memory for tpu_custom_call.1']
    #allocation5 [shape = 'u8[393216]{0}', space=vmem, size = 0x60000, scoped, tag = 'input window, operand 1, single buffered']
    #allocation6 [shape = 's32[1]{0}', space=sflag, size = 0x4, scoped, tag = 'scoped memory for tpu_custom_call.1']
    #allocation7 [shape = 'u8[32768]{0}', space=vmem, size = 0x8000, scoped, tag = 'input window, operand 2, single buffered']
    #allocation8 [shape = 'u8[4096]{0}', space=vmem, size = 0x1000, scoped, tag = 'output window, operand 0, single buffered']
    %9 = vsyncpa [#allocation3], 0
    %10 = vsyncpa [#allocation6], 0
    %11 = vsyncpa [#allocation4], 0
    // Predicated region
    $region2: #{tpu_custom_call.1} parent=1 // pred_check
      _
    $region3: #{tpu_custom_call.1} parent=1 // pred_check_branch
      %13 = sbr.rel (0) target = $region5
    $region4: #{tpu_custom_call.1} parent=1 // pred_region
      %15 = vsyncadd [#allocation3], 0
      %s17 = sshll.u32 %s0, 4
      %s18 = int_to_ptr.hbm [resolvable:$true] %s17
      %s19 = sshll.u32 [#allocation2], 4
      %s20 = int_to_ptr.vmem [resolvable:$true] %s19
      %22 = dma.hbm_to_vmem [thread:$0]  %s18, 1536, %s20, [#allocation3]
    $region5: #{tpu_custom_call.1} parent=1 // pred_fallthru
      _
    // Predicated region
    $region6: #{tpu_custom_call.1} parent=1 // pred_check
      _
    $region7: #{tpu_custom_call.1} parent=1 // pred_check_branch
      %24 = sbr.rel (0) target = $region9
    $region8: #{tpu_custom_call.1} parent=1 // pred_region
      %26 = vsyncadd [#allocation6], 0
      %s27 = sshll.u32 %s1, 4
      %s28 = int_to_ptr.hbm [resolvable:$true] %s27
      %s29 = sshll.u32 [#allocation5], 4
      %s30 = int_to_ptr.vmem [resolvable:$true] %s29
      %35 = dma.hbm_to_vmem [thread:$0]  %s28, 12288, %s30, [#allocation6], 1536, 1536, 96
    $region9: #{tpu_custom_call.1} parent=1 // pred_fallthru
      _
    // Predicated region
    $region10: #{tpu_custom_call.1} parent=1 // pred_check
      _
    $region11: #{tpu_custom_call.1} parent=1 // pred_check_branch
      %37 = sbr.rel (0) target = $region13
    $region12: #{tpu_custom_call.1} parent=1 // pred_region
      %39 = vsyncadd [#allocation6], 0
      %s40 = sshll.u32 %s2, 4
      %s41 = int_to_ptr.hbm [resolvable:$true] %s40
      %s42 = sshll.u32 [#allocation7], 4
      %s43 = int_to_ptr.vmem [resolvable:$true] %s42
      %48 = dma.hbm_to_vmem [thread:$0]  %s41, 1024, %s43, [#allocation6], 128, 128, 8
    $region13: #{tpu_custom_call.1} parent=1 // pred_fallthru
      _
    // Predicated region
    $region14: #{tpu_custom_call.1} parent=1 // pred_check
      _
    $region15: #{tpu_custom_call.1} parent=1 // pred_check_branch
      %50 = sbr.rel (0) target = $region17
    $region16: #{tpu_custom_call.1} parent=1 // pred_region
      _
    $region17: #{tpu_custom_call.1} parent=1 // pred_fallthru
      _
    // Predicated region
    $region18: #{tpu_custom_call.1} parent=1 // pred_check
      _
    $region19: #{tpu_custom_call.1} parent=1 // pred_check_branch
      %52 = sbr.rel (0) target = $region21
    $region20: #{tpu_custom_call.1} parent=1 // pred_region
      %54 = dma.done [#allocation3], 1536
    $region21: #{tpu_custom_call.1} parent=1 // pred_fallthru
      _
    // Predicated region
    $region22: #{tpu_custom_call.1} parent=1 // pred_check
      _
    $region23: #{tpu_custom_call.1} parent=1 // pred_check_branch
      %56 = sbr.rel (0) target = $region25
    $region24: #{tpu_custom_call.1} parent=1 // pred_region
      %58 = dma.done [#allocation6], 12288
    $region25: #{tpu_custom_call.1} parent=1 // pred_fallthru
      _
    // Predicated region
    $region26: #{tpu_custom_call.1} parent=1 // pred_check
      _
    $region27: #{tpu_custom_call.1} parent=1 // pred_check_branch
      %60 = sbr.rel (0) target = $region29
    $region28: #{tpu_custom_call.1} parent=1 // pred_region
      %62 = dma.done [#allocation6], 1024
    $region29: #{tpu_custom_call.1} parent=1 // pred_fallthru
      _
    %v64 = vld [vmem:[#allocation2] sm:$0xff]
    %v65 = vld [vmem:[#allocation2 + $0x8] sm:$0xff]
    %v66 = vld [vmem:[#allocation2 + $0x10] sm:$0xff]
    %v67 = vld [vmem:[#allocation2 + $0x18] sm:$0xff]
    %v68 = vld [vmem:[#allocation2 + $0x20] sm:$0xff]
    %v69 = vld [vmem:[#allocation2 + $0x28] sm:$0xff]
    %v70 = vld [vmem:[#allocation2 + $0x30] sm:$0xff]
    %v71 = vld [vmem:[#allocation2 + $0x38] sm:$0xff]
    %v72 = vld [vmem:[#allocation2 + $0x40] sm:$0xff]
    %v73 = vld [vmem:[#allocation2 + $0x48] sm:$0xff]
    %v74 = vld [vmem:[#allocation2 + $0x50] sm:$0xff]
    %v75 = vld [vmem:[#allocation2 + $0x58] sm:$0xff]
    %v76 = vld [vmem:[#allocation5] sm:$0xff]
    %v77 = vld [vmem:[#allocation5 + $0x8] sm:$0xff]
    %v78 = vld [vmem:[#allocation5 + $0x10] sm:$0xff]
    %v79 = vld [vmem:[#allocation5 + $0x18] sm:$0xff]
    %v80 = vld [vmem:[#allocation5 + $0x20] sm:$0xff]
    %v81 = vld [vmem:[#allocation5 + $0x28] sm:$0xff]
    %v82 = vld [vmem:[#allocation5 + $0x30] sm:$0xff]
    %v83 = vld [vmem:[#allocation5 + $0x38] sm:$0xff]
    %v84 = vld [vmem:[#allocation5 + $0x40] sm:$0xff]
    %v85 = vld [vmem:[#allocation5 + $0x48] sm:$0xff]
    %v86 = vld [vmem:[#allocation5 + $0x50] sm:$0xff]
    %v87 = vld [vmem:[#allocation5 + $0x58] sm:$0xff]
    %v88 = vld [vmem:[#allocation5 + $0x60] sm:$0xff]
    %v89 = vld [vmem:[#allocation5 + $0x68] sm:$0xff]
    %v90 = vld [vmem:[#allocation5 + $0x70] sm:$0xff]
    %v91 = vld [vmem:[#allocation5 + $0x78] sm:$0xff]
    %v92 = vld [vmem:[#allocation5 + $0x80] sm:$0xff]
    %v93 = vld [vmem:[#allocation5 + $0x88] sm:$0xff]
    %v94 = vld [vmem:[#allocation5 + $0x90] sm:$0xff]
    %v95 = vld [vmem:[#allocation5 + $0x98] sm:$0xff]
    %v96 = vld [vmem:[#allocation5 + $0xa0] sm:$0xff]
    %v97 = vld [vmem:[#allocation5 + $0xa8] sm:$0xff]
    %v98 = vld [vmem:[#allocation5 + $0xb0] sm:$0xff]
    %v99 = vld [vmem:[#allocation5 + $0xb8] sm:$0xff]
    %v100 = vld [vmem:[#allocation5 + $0xc0] sm:$0xff]
    %v101 = vld [vmem:[#allocation5 + $0xc8] sm:$0xff]
    %v102 = vld [vmem:[#allocation5 + $0xd0] sm:$0xff]
    %v103 = vld [vmem:[#allocation5 + $0xd8] sm:$0xff]
    %v104 = vld [vmem:[#allocation5 + $0xe0] sm:$0xff]
    %v105 = vld [vmem:[#allocation5 + $0xe8] sm:$0xff]
    %v106 = vld [vmem:[#allocation5 + $0xf0] sm:$0xff]
    %v107 = vld [vmem:[#allocation5 + $0xf8] sm:$0xff]
    %v108 = vld [vmem:[#allocation5 + $0x100] sm:$0xff]
    %v109 = vld [vmem:[#allocation5 + $0x108] sm:$0xff]
    %v110 = vld [vmem:[#allocation5 + $0x110] sm:$0xff]
    %v111 = vld [vmem:[#allocation5 + $0x118] sm:$0xff]
    %v112 = vld [vmem:[#allocation5 + $0x120] sm:$0xff]
    %v113 = vld [vmem:[#allocation5 + $0x128] sm:$0xff]
    %v114 = vld [vmem:[#allocation5 + $0x130] sm:$0xff]
    %v115 = vld [vmem:[#allocation5 + $0x138] sm:$0xff]
    %v116 = vld [vmem:[#allocation5 + $0x140] sm:$0xff]
    %v117 = vld [vmem:[#allocation5 + $0x148] sm:$0xff]
    %v118 = vld [vmem:[#allocation5 + $0x150] sm:$0xff]
    %v119 = vld [vmem:[#allocation5 + $0x158] sm:$0xff]
    %v120 = vld [vmem:[#allocation5 + $0x160] sm:$0xff]
    %v121 = vld [vmem:[#allocation5 + $0x168] sm:$0xff]
    %v122 = vld [vmem:[#allocation5 + $0x170] sm:$0xff]
    %v123 = vld [vmem:[#allocation5 + $0x178] sm:$0xff]
    %v124 = vld [vmem:[#allocation5 + $0x180] sm:$0xff]
    %v125 = vld [vmem:[#allocation5 + $0x188] sm:$0xff]
    %v126 = vld [vmem:[#allocation5 + $0x190] sm:$0xff]
    %v127 = vld [vmem:[#allocation5 + $0x198] sm:$0xff]
    %v128 = vld [vmem:[#allocation5 + $0x1a0] sm:$0xff]
    %v129 = vld [vmem:[#allocation5 + $0x1a8] sm:$0xff]
    %v130 = vld [vmem:[#allocation5 + $0x1b0] sm:$0xff]
    %v131 = vld [vmem:[#allocation5 + $0x1b8] sm:$0xff]
    %v132 = vld [vmem:[#allocation5 + $0x1c0] sm:$0xff]
    %v133 = vld [vmem:[#allocation5 + $0x1c8] sm:$0xff]
    %v134 = vld [vmem:[#allocation5 + $0x1d0] sm:$0xff]
    %v135 = vld [vmem:[#allocation5 + $0x1d8] sm:$0xff]
    %v136 = vld [vmem:[#allocation5 + $0x1e0] sm:$0xff]
    %v137 = vld [vmem:[#allocation5 + $0x1e8] sm:$0xff]
    %v138 = vld [vmem:[#allocation5 + $0x1f0] sm:$0xff]
    %v139 = vld [vmem:[#allocation5 + $0x1f8] sm:$0xff]
    %v140 = vld [vmem:[#allocation5 + $0x200] sm:$0xff]
    %v141 = vld [vmem:[#allocation5 + $0x208] sm:$0xff]
    %v142 = vld [vmem:[#allocation5 + $0x210] sm:$0xff]
    %v143 = vld [vmem:[#allocation5 + $0x218] sm:$0xff]
    %v144 = vld [vmem:[#allocation5 + $0x220] sm:$0xff]
    %v145 = vld [vmem:[#allocation5 + $0x228] sm:$0xff]
    %v146 = vld [vmem:[#allocation5 + $0x230] sm:$0xff]
    %v147 = vld [vmem:[#allocation5 + $0x238] sm:$0xff]
    %v148 = vld [vmem:[#allocation5 + $0x240] sm:$0xff]
    %v149 = vld [vmem:[#allocation5 + $0x248] sm:$0xff]
    %v150 = vld [vmem:[#allocation5 + $0x250] sm:$0xff]
    %v151 = vld [vmem:[#allocation5 + $0x258] sm:$0xff]
    %v152 = vld [vmem:[#allocation5 + $0x260] sm:$0xff]
    %v153 = vld [vmem:[#allocation5 + $0x268] sm:$0xff]
    %v154 = vld [vmem:[#allocation5 + $0x270] sm:$0xff]
    %v155 = vld [vmem:[#allocation5 + $0x278] sm:$0xff]
    %v156 = vld [vmem:[#allocation5 + $0x280] sm:$0xff]
    %v157 = vld [vmem:[#allocation5 + $0x288] sm:$0xff]
    %v158 = vld [vmem:[#allocation5 + $0x290] sm:$0xff]
    %v159 = vld [vmem:[#allocation5 + $0x298] sm:$0xff]
    %v160 = vld [vmem:[#allocation5 + $0x2a0] sm:$0xff]
    %v161 = vld [vmem:[#allocation5 + $0x2a8] sm:$0xff]
    %v162 = vld [vmem:[#allocation5 + $0x2b0] sm:$0xff]
    %v163 = vld [vmem:[#allocation5 + $0x2b8] sm:$0xff]
    %v164 = vld [vmem:[#allocation5 + $0x2c0] sm:$0xff]
    %v165 = vld [vmem:[#allocation5 + $0x2c8] sm:$0xff]
    %v166 = vld [vmem:[#allocation5 + $0x2d0] sm:$0xff]
    %v167 = vld [vmem:[#allocation5 + $0x2d8] sm:$0xff]
    %v168 = vld [vmem:[#allocation5 + $0x2e0] sm:$0xff]
    %v169 = vld [vmem:[#allocation5 + $0x2e8] sm:$0xff]
    %v170 = vld [vmem:[#allocation5 + $0x2f0] sm:$0xff]
    %v171 = vld [vmem:[#allocation5 + $0x2f8] sm:$0xff]
    %v172 = vld [vmem:[%s3] sm:$0x3]
    %v173 = vperm.slane %v172, 0
    %v186 = vunpack.c.l.b16 %v64
    %v187 = vunpack.c.h.b16 %v64
    %v188 = vunpack.c.l.b16 %v65
    %v189 = vunpack.c.h.b16 %v65
    %v190 = vunpack.c.l.b16 %v66
    %v191 = vunpack.c.h.b16 %v66
    %v192 = vunpack.c.l.b16 %v67
    %v193 = vunpack.c.h.b16 %v67
    %v194 = vunpack.c.l.b16 %v68
    %v195 = vunpack.c.h.b16 %v68
    %v196 = vunpack.c.l.b16 %v69
    %v197 = vunpack.c.h.b16 %v69
    %v198 = vunpack.c.l.b16 %v70
    %v199 = vunpack.c.h.b16 %v70
    %v200 = vunpack.c.l.b16 %v71
    %v201 = vunpack.c.h.b16 %v71
    %v202 = vunpack.c.l.b16 %v72
    %v203 = vunpack.c.h.b16 %v72
    %v204 = vunpack.c.l.b16 %v73
    %v205 = vunpack.c.h.b16 %v73
    %v206 = vunpack.c.l.b16 %v74
    %v207 = vunpack.c.h.b16 %v74
    %v208 = vunpack.c.l.b16 %v75
    %v209 = vunpack.c.h.b16 %v75
    %v210 = vpack.c.b16 %v186, %v186
    %v211 = vpack.c.b16 %v187, %v187
    %v212 = vpack.c.b16 %v188, %v188
    %v213 = vpack.c.b16 %v189, %v189
    %v214 = vpack.c.b16 %v190, %v190
    %v215 = vpack.c.b16 %v191, %v191
    %v216 = vpack.c.b16 %v192, %v192
    %v217 = vpack.c.b16 %v193, %v193
    %v218 = vpack.c.b16 %v194, %v194
    %v219 = vpack.c.b16 %v195, %v195
    %v220 = vpack.c.b16 %v196, %v196
    %v221 = vpack.c.b16 %v197, %v197
    %v222 = vpack.c.b16 %v198, %v198
    %v223 = vpack.c.b16 %v199, %v199
    %v224 = vpack.c.b16 %v200, %v200
    %v225 = vpack.c.b16 %v201, %v201
    %v226 = vpack.c.b16 %v202, %v202
    %v227 = vpack.c.b16 %v203, %v203
    %v228 = vpack.c.b16 %v204, %v204
    %v229 = vpack.c.b16 %v205, %v205
    %v230 = vpack.c.b16 %v206, %v206
    %v231 = vpack.c.b16 %v207, %v207
    %v232 = vpack.c.b16 %v208, %v208
    %v233 = vpack.c.b16 %v209, %v209
    %v354 = vunpack.c.l.b16 %v76
    %v355 = vunpack.c.h.b16 %v76
    %v356 = vunpack.c.l.b16 %v77
    %v357 = vunpack.c.h.b16 %v77
    %v358 = vunpack.c.l.b16 %v78
    %v359 = vunpack.c.h.b16 %v78
    %v360 = vunpack.c.l.b16 %v79
    %v361 = vunpack.c.h.b16 %v79
    %v362 = vunpack.c.l.b16 %v80
    %v363 = vunpack.c.h.b16 %v80
    %v364 = vunpack.c.l.b16 %v81
    %v365 = vunpack.c.h.b16 %v81
    %v366 = vunpack.c.l.b16 %v82
    %v367 = vunpack.c.h.b16 %v82
    %v368 = vunpack.c.l.b16 %v83
    %v369 = vunpack.c.h.b16 %v83
    %v370 = vunpack.c.l.b16 %v84
    %v371 = vunpack.c.h.b16 %v84
    %v372 = vunpack.c.l.b16 %v85
    %v373 = vunpack.c.h.b16 %v85
    %v374 = vunpack.c.l.b16 %v86
    %v375 = vunpack.c.h.b16 %v86
    %v376 = vunpack.c.l.b16 %v87
    %v377 = vunpack.c.h.b16 %v87
    %v378 = vunpack.c.l.b16 %v88
    %v379 = vunpack.c.h.b16 %v88
    %v380 = vunpack.c.l.b16 %v89
    %v381 = vunpack.c.h.b16 %v89
    %v382 = vunpack.c.l.b16 %v90
    %v383 = vunpack.c.h.b16 %v90
    %v384 = vunpack.c.l.b16 %v91
    %v385 = vunpack.c.h.b16 %v91
    %v386 = vunpack.c.l.b16 %v92
    %v387 = vunpack.c.h.b16 %v92
    %v388 = vunpack.c.l.b16 %v93
    %v389 = vunpack.c.h.b16 %v93
    %v390 = vunpack.c.l.b16 %v94
    %v391 = vunpack.c.h.b16 %v94
    %v392 = vunpack.c.l.b16 %v95
    %v393 = vunpack.c.h.b16 %v95
    %v394 = vunpack.c.l.b16 %v96
    %v395 = vunpack.c.h.b16 %v96
    %v396 = vunpack.c.l.b16 %v97
    %v397 = vunpack.c.h.b16 %v97
    %v398 = vunpack.c.l.b16 %v98
    %v399 = vunpack.c.h.b16 %v98
    %v400 = vunpack.c.l.b16 %v99
    %v401 = vunpack.c.h.b16 %v99
    %v402 = vunpack.c.l.b16 %v100
    %v403 = vunpack.c.h.b16 %v100
    %v404 = vunpack.c.l.b16 %v101
    %v405 = vunpack.c.h.b16 %v101
    %v406 = vunpack.c.l.b16 %v102
    %v407 = vunpack.c.h.b16 %v102
    %v408 = vunpack.c.l.b16 %v103
    %v409 = vunpack.c.h.b16 %v103
    %v410 = vunpack.c.l.b16 %v104
    %v411 = vunpack.c.h.b16 %v104
    %v412 = vunpack.c.l.b16 %v105
    %v413 = vunpack.c.h.b16 %v105
    %v414 = vunpack.c.l.b16 %v106
    %v415 = vunpack.c.h.b16 %v106
    %v416 = vunpack.c.l.b16 %v107
    %v417 = vunpack.c.h.b16 %v107
    %v418 = vunpack.c.l.b16 %v108
    %v419 = vunpack.c.h.b16 %v108
    %v420 = vunpack.c.l.b16 %v109
    %v421 = vunpack.c.h.b16 %v109
    %v422 = vunpack.c.l.b16 %v110
    %v423 = vunpack.c.h.b16 %v110
    %v424 = vunpack.c.l.b16 %v111
    %v425 = vunpack.c.h.b16 %v111
    %v426 = vunpack.c.l.b16 %v112
    %v427 = vunpack.c.h.b16 %v112
    %v428 = vunpack.c.l.b16 %v113
    %v429 = vunpack.c.h.b16 %v113
    %v430 = vunpack.c.l.b16 %v114
    %v431 = vunpack.c.h.b16 %v114
    %v432 = vunpack.c.l.b16 %v115
    %v433 = vunpack.c.h.b16 %v115
    %v434 = vunpack.c.l.b16 %v116
    %v435 = vunpack.c.h.b16 %v116
    %v436 = vunpack.c.l.b16 %v117
    %v437 = vunpack.c.h.b16 %v117
    %v438 = vunpack.c.l.b16 %v118
    %v439 = vunpack.c.h.b16 %v118
    %v440 = vunpack.c.l.b16 %v119
    %v441 = vunpack.c.h.b16 %v119
    %v442 = vunpack.c.l.b16 %v120
    %v443 = vunpack.c.h.b16 %v120
    %v444 = vunpack.c.l.b16 %v121
    %v445 = vunpack.c.h.b16 %v121
    %v446 = vunpack.c.l.b16 %v122
    %v447 = vunpack.c.h.b16 %v122
    %v448 = vunpack.c.l.b16 %v123
    %v449 = vunpack.c.h.b16 %v123
    %v450 = vunpack.c.l.b16 %v124
    %v451 = vunpack.c.h.b16 %v124
    %v452 = vunpack.c.l.b16 %v125
    %v453 = vunpack.c.h.b16 %v125
    %v454 = vunpack.c.l.b16 %v126
    %v455 = vunpack.c.h.b16 %v126
    %v456 = vunpack.c.l.b16 %v127
    %v457 = vunpack.c.h.b16 %v127
    %v458 = vunpack.c.l.b16 %v128
    %v459 = vunpack.c.h.b16 %v128
    %v460 = vunpack.c.l.b16 %v129
    %v461 = vunpack.c.h.b16 %v129
    %v462 = vunpack.c.l.b16 %v130
    %v463 = vunpack.c.h.b16 %v130
    %v464 = vunpack.c.l.b16 %v131
    %v465 = vunpack.c.h.b16 %v131
    %v466 = vunpack.c.l.b16 %v132
    %v467 = vunpack.c.h.b16 %v132
    %v468 = vunpack.c.l.b16 %v133
    %v469 = vunpack.c.h.b16 %v133
    %v470 = vunpack.c.l.b16 %v134
    %v471 = vunpack.c.h.b16 %v134
    %v472 = vunpack.c.l.b16 %v135
    %v473 = vunpack.c.h.b16 %v135
    %v474 = vunpack.c.l.b16 %v136
    %v475 = vunpack.c.h.b16 %v136
    %v476 = vunpack.c.l.b16 %v137
    %v477 = vunpack.c.h.b16 %v137
    %v478 = vunpack.c.l.b16 %v138
    %v479 = vunpack.c.h.b16 %v138
    %v480 = vunpack.c.l.b16 %v139
    %v481 = vunpack.c.h.b16 %v139
    %v482 = vunpack.c.l.b16 %v140
    %v483 = vunpack.c.h.b16 %v140
    %v484 = vunpack.c.l.b16 %v141
    %v485 = vunpack.c.h.b16 %v141
    %v486 = vunpack.c.l.b16 %v142
    %v487 = vunpack.c.h.b16 %v142
    %v488 = vunpack.c.l.b16 %v143
    %v489 = vunpack.c.h.b16 %v143
    %v490 = vunpack.c.l.b16 %v144
    %v491 = vunpack.c.h.b16 %v144
    %v492 = vunpack.c.l.b16 %v145
    %v493 = vunpack.c.h.b16 %v145
    %v494 = vunpack.c.l.b16 %v146
    %v495 = vunpack.c.h.b16 %v146
    %v496 = vunpack.c.l.b16 %v147
    %v497 = vunpack.c.h.b16 %v147
    %v498 = vunpack.c.l.b16 %v148
    %v499 = vunpack.c.h.b16 %v148
    %v500 = vunpack.c.l.b16 %v149
    %v501 = vunpack.c.h.b16 %v149
    %v502 = vunpack.c.l.b16 %v150
    %v503 = vunpack.c.h.b16 %v150
    %v504 = vunpack.c.l.b16 %v151
    %v505 = vunpack.c.h.b16 %v151
    %v506 = vunpack.c.l.b16 %v152
    %v507 = vunpack.c.h.b16 %v152
    %v508 = vunpack.c.l.b16 %v153
    %v509 = vunpack.c.h.b16 %v153
    %v510 = vunpack.c.l.b16 %v154
    %v511 = vunpack.c.h.b16 %v154
    %v512 = vunpack.c.l.b16 %v155
    %v513 = vunpack.c.h.b16 %v155
    %v514 = vunpack.c.l.b16 %v156
    %v515 = vunpack.c.h.b16 %v156
    %v516 = vunpack.c.l.b16 %v157
    %v517 = vunpack.c.h.b16 %v157
    %v518 = vunpack.c.l.b16 %v158
    %v519 = vunpack.c.h.b16 %v158
    %v520 = vunpack.c.l.b16 %v159
    %v521 = vunpack.c.h.b16 %v159
    %v522 = vunpack.c.l.b16 %v160
    %v523 = vunpack.c.h.b16 %v160
    %v524 = vunpack.c.l.b16 %v161
    %v525 = vunpack.c.h.b16 %v161
    %v526 = vunpack.c.l.b16 %v162
    %v527 = vunpack.c.h.b16 %v162
    %v528 = vunpack.c.l.b16 %v163
    %v529 = vunpack.c.h.b16 %v163
    %v530 = vunpack.c.l.b16 %v164
    %v531 = vunpack.c.h.b16 %v164
    %v532 = vunpack.c.l.b16 %v165
    %v533 = vunpack.c.h.b16 %v165
    %v534 = vunpack.c.l.b16 %v166
    %v535 = vunpack.c.h.b16 %v166
    %v536 = vunpack.c.l.b16 %v167
    %v537 = vunpack.c.h.b16 %v167
    %v538 = vunpack.c.l.b16 %v168
    %v539 = vunpack.c.h.b16 %v168
    %v540 = vunpack.c.l.b16 %v169
    %v541 = vunpack.c.h.b16 %v169
    %v542 = vunpack.c.l.b16 %v170
    %v543 = vunpack.c.h.b16 %v170
    %v544 = vunpack.c.l.b16 %v171
    %v545 = vunpack.c.h.b16 %v171
    %v546 = vpack.c.b16 %v378, %v354
    %v547 = vpack.c.b16 %v379, %v355
    %v548 = vpack.c.b16 %v380, %v356
    %v549 = vpack.c.b16 %v381, %v357
    %v550 = vpack.c.b16 %v382, %v358
    %v551 = vpack.c.b16 %v383, %v359
    %v552 = vpack.c.b16 %v384, %v360
    %v553 = vpack.c.b16 %v385, %v361
    %v554 = vpack.c.b16 %v386, %v362
    %v555 = vpack.c.b16 %v387, %v363
    %v556 = vpack.c.b16 %v388, %v364
    %v557 = vpack.c.b16 %v389, %v365
    %v558 = vpack.c.b16 %v390, %v366
    %v559 = vpack.c.b16 %v391, %v367
    %v560 = vpack.c.b16 %v392, %v368
    %v561 = vpack.c.b16 %v393, %v369
    %v562 = vpack.c.b16 %v394, %v370
    %v563 = vpack.c.b16 %v395, %v371
    %v564 = vpack.c.b16 %v396, %v372
    %v565 = vpack.c.b16 %v397, %v373
    %v566 = vpack.c.b16 %v398, %v374
    %v567 = vpack.c.b16 %v399, %v375
    %v568 = vpack.c.b16 %v400, %v376
    %v569 = vpack.c.b16 %v401, %v377
    %v570 = vpack.c.b16 %v426, %v402
    %v571 = vpack.c.b16 %v427, %v403
    %v572 = vpack.c.b16 %v428, %v404
    %v573 = vpack.c.b16 %v429, %v405
    %v574 = vpack.c.b16 %v430, %v406
    %v575 = vpack.c.b16 %v431, %v407
    %v576 = vpack.c.b16 %v432, %v408
    %v577 = vpack.c.b16 %v433, %v409
    %v578 = vpack.c.b16 %v434, %v410
    %v579 = vpack.c.b16 %v435, %v411
    %v580 = vpack.c.b16 %v436, %v412
    %v581 = vpack.c.b16 %v437, %v413
    %v582 = vpack.c.b16 %v438, %v414
    %v583 = vpack.c.b16 %v439, %v415
    %v584 = vpack.c.b16 %v440, %v416
    %v585 = vpack.c.b16 %v441, %v417
    %v586 = vpack.c.b16 %v442, %v418
    %v587 = vpack.c.b16 %v443, %v419
    %v588 = vpack.c.b16 %v444, %v420
    %v589 = vpack.c.b16 %v445, %v421
    %v590 = vpack.c.b16 %v446, %v422
    %v591 = vpack.c.b16 %v447, %v423
    %v592 = vpack.c.b16 %v448, %v424
    %v593 = vpack.c.b16 %v449, %v425
    %v594 = vpack.c.b16 %v474, %v450
    %v595 = vpack.c.b16 %v475, %v451
    %v596 = vpack.c.b16 %v476, %v452
    %v597 = vpack.c.b16 %v477, %v453
    %v598 = vpack.c.b16 %v478, %v454
    %v599 = vpack.c.b16 %v479, %v455
    %v600 = vpack.c.b16 %v480, %v456
    %v601 = vpack.c.b16 %v481, %v457
    %v602 = vpack.c.b16 %v482, %v458
    %v603 = vpack.c.b16 %v483, %v459
    %v604 = vpack.c.b16 %v484, %v460
    %v605 = vpack.c.b16 %v485, %v461
    %v606 = vpack.c.b16 %v486, %v462
    %v607 = vpack.c.b16 %v487, %v463
    %v608 = vpack.c.b16 %v488, %v464
    %v609 = vpack.c.b16 %v489, %v465
    %v610 = vpack.c.b16 %v490, %v466
    %v611 = vpack.c.b16 %v491, %v467
    %v612 = vpack.c.b16 %v492, %v468
    %v613 = vpack.c.b16 %v493, %v469
    %v614 = vpack.c.b16 %v494, %v470
    %v615 = vpack.c.b16 %v495, %v471
    %v616 = vpack.c.b16 %v496, %v472
    %v617 = vpack.c.b16 %v497, %v473
    %v618 = vpack.c.b16 %v522, %v498
    %v619 = vpack.c.b16 %v523, %v499
    %v620 = vpack.c.b16 %v524, %v500
    %v621 = vpack.c.b16 %v525, %v501
    %v622 = vpack.c.b16 %v526, %v502
    %v623 = vpack.c.b16 %v527, %v503
    %v624 = vpack.c.b16 %v528, %v504
    %v625 = vpack.c.b16 %v529, %v505
    %v626 = vpack.c.b16 %v530, %v506
    %v627 = vpack.c.b16 %v531, %v507
    %v628 = vpack.c.b16 %v532, %v508
    %v629 = vpack.c.b16 %v533, %v509
    %v630 = vpack.c.b16 %v534, %v510
    %v631 = vpack.c.b16 %v535, %v511
    %v632 = vpack.c.b16 %v536, %v512
    %v633 = vpack.c.b16 %v537, %v513
    %v634 = vpack.c.b16 %v538, %v514
    %v635 = vpack.c.b16 %v539, %v515
    %v636 = vpack.c.b16 %v540, %v516
    %v637 = vpack.c.b16 %v541, %v517
    %v638 = vpack.c.b16 %v542, %v518
    %v639 = vpack.c.b16 %v543, %v519
    %v640 = vpack.c.b16 %v544, %v520
    %v641 = vpack.c.b16 %v545, %v521
    %738 = vmatpush.bf16.xpose.msra.mxu0 0
    %739 = vmatpush.bf16.xpose.msra.mxu0 0
    %740 = vmatpush.bf16.xpose.msra.mxu0 0
    %741 = vmatpush.bf16.xpose.msra.mxu0 0
    %742 = vmatpush.bf16.xpose.msra.mxu0 %v618
    %743 = vmatpush.bf16.xpose.msra.mxu0 %v594
    %744 = vmatpush.bf16.xpose.msra.mxu0 %v570
    %745 = vmatpush.bf16.xpose.msra.mxu0 %v546
    %746 = vmatmul.bf16.gmra.mxu0 %v210
    %v747 = vpop.f32.mrf.mxu0
    %v748 = vadd.f32 %v173, %v747
    %v749 = vpop.f32.mrf.mxu0
    %750 = vdwg.mxu0
    %751 = vmatpush.bf16.xpose.msra.mxu0 0
    %752 = vmatpush.bf16.xpose.msra.mxu0 0
    %753 = vmatpush.bf16.xpose.msra.mxu0 0
    %754 = vmatpush.bf16.xpose.msra.mxu0 0
    %755 = vmatpush.bf16.xpose.msra.mxu0 %v619
    %756 = vmatpush.bf16.xpose.msra.mxu0 %v595
    %757 = vmatpush.bf16.xpose.msra.mxu0 %v571
    %758 = vmatpush.bf16.xpose.msra.mxu0 %v547
    %759 = vmatmul.bf16.gmra.mxu0 %v211
    %v760 = vpop.f32.mrf.mxu0
    %v761 = vadd.f32 %v748, %v760
    %v762 = vpop.f32.mrf.mxu0
    %763 = vdwg.mxu0
    %764 = vmatpush.bf16.xpose.msra.mxu0 0
    %765 = vmatpush.bf16.xpose.msra.mxu0 0
    %766 = vmatpush.bf16.xpose.msra.mxu0 0
    %767 = vmatpush.bf16.xpose.msra.mxu0 0
    %768 = vmatpush.bf16.xpose.msra.mxu0 %v620
    %769 = vmatpush.bf16.xpose.msra.mxu0 %v596
    %770 = vmatpush.bf16.xpose.msra.mxu0 %v572
    %771 = vmatpush.bf16.xpose.msra.mxu0 %v548
    %772 = vmatmul.bf16.gmra.mxu0 %v212
    %v773 = vpop.f32.mrf.mxu0
    %v774 = vadd.f32 %v761, %v773
    %v775 = vpop.f32.mrf.mxu0
    %776 = vdwg.mxu0
    %777 = vmatpush.bf16.xpose.msra.mxu0 0
    %778 = vmatpush.bf16.xpose.msra.mxu0 0
    %779 = vmatpush.bf16.xpose.msra.mxu0 0
    %780 = vmatpush.bf16.xpose.msra.mxu0 0
    %781 = vmatpush.bf16.xpose.msra.mxu0 %v621
    %782 = vmatpush.bf16.xpose.msra.mxu0 %v597
    %783 = vmatpush.bf16.xpose.msra.mxu0 %v573
    %784 = vmatpush.bf16.xpose.msra.mxu0 %v549
    %785 = vmatmul.bf16.gmra.mxu0 %v213
    %v786 = vpop.f32.mrf.mxu0
    %v787 = vadd.f32 %v774, %v786
    %v788 = vpop.f32.mrf.mxu0
    %789 = vdwg.mxu0
    %790 = vmatpush.bf16.xpose.msra.mxu0 0
    %791 = vmatpush.bf16.xpose.msra.mxu0 0
    %792 = vmatpush.bf16.xpose.msra.mxu0 0
    %793 = vmatpush.bf16.xpose.msra.mxu0 0
    %794 = vmatpush.bf16.xpose.msra.mxu0 %v622
    %795 = vmatpush.bf16.xpose.msra.mxu0 %v598
    %796 = vmatpush.bf16.xpose.msra.mxu0 %v574
    %797 = vmatpush.bf16.xpose.msra.mxu0 %v550
    %798 = vmatmul.bf16.gmra.mxu0 %v214
    %v799 = vpop.f32.mrf.mxu0
    %v800 = vadd.f32 %v787, %v799
    %v801 = vpop.f32.mrf.mxu0
    %802 = vdwg.mxu0
    %803 = vmatpush.bf16.xpose.msra.mxu0 0
    %804 = vmatpush.bf16.xpose.msra.mxu0 0
    %805 = vmatpush.bf16.xpose.msra.mxu0 0
    %806 = vmatpush.bf16.xpose.msra.mxu0 0
    %807 = vmatpush.bf16.xpose.msra.mxu0 %v623
    %808 = vmatpush.bf16.xpose.msra.mxu0 %v599
    %809 = vmatpush.bf16.xpose.msra.mxu0 %v575
    %810 = vmatpush.bf16.xpose.msra.mxu0 %v551
    %811 = vmatmul.bf16.gmra.mxu0 %v215
    %v812 = vpop.f32.mrf.mxu0
    %v813 = vadd.f32 %v800, %v812
    %v814 = vpop.f32.mrf.mxu0
    %815 = vdwg.mxu0
    %816 = vmatpush.bf16.xpose.msra.mxu0 0
    %817 = vmatpush.bf16.xpose.msra.mxu0 0
    %818 = vmatpush.bf16.xpose.msra.mxu0 0
    %819 = vmatpush.bf16.xpose.msra.mxu0 0
    %820 = vmatpush.bf16.xpose.msra.mxu0 %v624
    %821 = vmatpush.bf16.xpose.msra.mxu0 %v600
    %822 = vmatpush.bf16.xpose.msra.mxu0 %v576
    %823 = vmatpush.bf16.xpose.msra.mxu0 %v552
    %824 = vmatmul.bf16.gmra.mxu0 %v216
    %v825 = vpop.f32.mrf.mxu0
    %v826 = vadd.f32 %v813, %v825
    %v827 = vpop.f32.mrf.mxu0
    %828 = vdwg.mxu0
    %829 = vmatpush.bf16.xpose.msra.mxu0 0
    %830 = vmatpush.bf16.xpose.msra.mxu0 0
    %831 = vmatpush.bf16.xpose.msra.mxu0 0
    %832 = vmatpush.bf16.xpose.msra.mxu0 0
    %833 = vmatpush.bf16.xpose.msra.mxu0 %v625
    %834 = vmatpush.bf16.xpose.msra.mxu0 %v601
    %835 = vmatpush.bf16.xpose.msra.mxu0 %v577
    %836 = vmatpush.bf16.xpose.msra.mxu0 %v553
    %837 = vmatmul.bf16.gmra.mxu0 %v217
    %v838 = vpop.f32.mrf.mxu0
    %v839 = vadd.f32 %v826, %v838
    %v840 = vpop.f32.mrf.mxu0
    %841 = vdwg.mxu0
    %842 = vmatpush.bf16.xpose.msra.mxu0 0
    %843 = vmatpush.bf16.xpose.msra.mxu0 0
    %844 = vmatpush.bf16.xpose.msra.mxu0 0
    %845 = vmatpush.bf16.xpose.msra.mxu0 0
    %846 = vmatpush.bf16.xpose.msra.mxu0 %v626
    %847 = vmatpush.bf16.xpose.msra.mxu0 %v602
    %848 = vmatpush.bf16.xpose.msra.mxu0 %v578
    %849 = vmatpush.bf16.xpose.msra.mxu0 %v554
    %850 = vmatmul.bf16.gmra.mxu0 %v218
    %v851 = vpop.f32.mrf.mxu0
    %v852 = vadd.f32 %v839, %v851
    %v853 = vpop.f32.mrf.mxu0
    %854 = vdwg.mxu0
    %855 = vmatpush.bf16.xpose.msra.mxu0 0
    %856 = vmatpush.bf16.xpose.msra.mxu0 0
    %857 = vmatpush.bf16.xpose.msra.mxu0 0
    %858 = vmatpush.bf16.xpose.msra.mxu0 0
    %859 = vmatpush.bf16.xpose.msra.mxu0 %v627
    %860 = vmatpush.bf16.xpose.msra.mxu0 %v603
    %861 = vmatpush.bf16.xpose.msra.mxu0 %v579
    %862 = vmatpush.bf16.xpose.msra.mxu0 %v555
    %863 = vmatmul.bf16.gmra.mxu0 %v219
    %v864 = vpop.f32.mrf.mxu0
    %v865 = vadd.f32 %v852, %v864
    %v866 = vpop.f32.mrf.mxu0
    %867 = vdwg.mxu0
    %868 = vmatpush.bf16.xpose.msra.mxu0 0
    %869 = vmatpush.bf16.xpose.msra.mxu0 0
    %870 = vmatpush.bf16.xpose.msra.mxu0 0
    %871 = vmatpush.bf16.xpose.msra.mxu0 0
    %872 = vmatpush.bf16.xpose.msra.mxu0 %v628
    %873 = vmatpush.bf16.xpose.msra.mxu0 %v604
    %874 = vmatpush.bf16.xpose.msra.mxu0 %v580
    %875 = vmatpush.bf16.xpose.msra.mxu0 %v556
    %876 = vmatmul.bf16.gmra.mxu0 %v220
    %v877 = vpop.f32.mrf.mxu0
    %v878 = vadd.f32 %v865, %v877
    %v879 = vpop.f32.mrf.mxu0
    %880 = vdwg.mxu0
    %881 = vmatpush.bf16.xpose.msra.mxu0 0
    %882 = vmatpush.bf16.xpose.msra.mxu0 0
    %883 = vmatpush.bf16.xpose.msra.mxu0 0
    %884 = vmatpush.bf16.xpose.msra.mxu0 0
    %885 = vmatpush.bf16.xpose.msra.mxu0 %v629
    %886 = vmatpush.bf16.xpose.msra.mxu0 %v605
    %887 = vmatpush.bf16.xpose.msra.mxu0 %v581
    %888 = vmatpush.bf16.xpose.msra.mxu0 %v557
    %889 = vmatmul.bf16.gmra.mxu0 %v221
    %v890 = vpop.f32.mrf.mxu0
    %v891 = vadd.f32 %v878, %v890
    %v892 = vpop.f32.mrf.mxu0
    %893 = vdwg.mxu0
    %894 = vmatpush.bf16.xpose.msra.mxu0 0
    %895 = vmatpush.bf16.xpose.msra.mxu0 0
    %896 = vmatpush.bf16.xpose.msra.mxu0 0
    %897 = vmatpush.bf16.xpose.msra.mxu0 0
    %898 = vmatpush.bf16.xpose.msra.mxu0 %v630
    %899 = vmatpush.bf16.xpose.msra.mxu0 %v606
    %900 = vmatpush.bf16.xpose.msra.mxu0 %v582
    %901 = vmatpush.bf16.xpose.msra.mxu0 %v558
    %902 = vmatmul.bf16.gmra.mxu0 %v222
    %v903 = vpop.f32.mrf.mxu0
    %v904 = vadd.f32 %v891, %v903
    %v905 = vpop.f32.mrf.mxu0
    %906 = vdwg.mxu0
    %907 = vmatpush.bf16.xpose.msra.mxu0 0
    %908 = vmatpush.bf16.xpose.msra.mxu0 0
    %909 = vmatpush.bf16.xpose.msra.mxu0 0
    %910 = vmatpush.bf16.xpose.msra.mxu0 0
    %911 = vmatpush.bf16.xpose.msra.mxu0 %v631
    %912 = vmatpush.bf16.xpose.msra.mxu0 %v607
    %913 = vmatpush.bf16.xpose.msra.mxu0 %v583
    %914 = vmatpush.bf16.xpose.msra.mxu0 %v559
    %915 = vmatmul.bf16.gmra.mxu0 %v223
    %v916 = vpop.f32.mrf.mxu0
    %v917 = vadd.f32 %v904, %v916
    %v918 = vpop.f32.mrf.mxu0
    %919 = vdwg.mxu0
    %920 = vmatpush.bf16.xpose.msra.mxu0 0
    %921 = vmatpush.bf16.xpose.msra.mxu0 0
    %922 = vmatpush.bf16.xpose.msra.mxu0 0
    %923 = vmatpush.bf16.xpose.msra.mxu0 0
    %924 = vmatpush.bf16.xpose.msra.mxu0 %v632
    %925 = vmatpush.bf16.xpose.msra.mxu0 %v608
    %926 = vmatpush.bf16.xpose.msra.mxu0 %v584
    %927 = vmatpush.bf16.xpose.msra.mxu0 %v560
    %928 = vmatmul.bf16.gmra.mxu0 %v224
    %v929 = vpop.f32.mrf.mxu0
    %v930 = vadd.f32 %v917, %v929
    %v931 = vpop.f32.mrf.mxu0
    %932 = vdwg.mxu0
    %933 = vmatpush.bf16.xpose.msra.mxu0 0
    %934 = vmatpush.bf16.xpose.msra.mxu0 0
    %935 = vmatpush.bf16.xpose.msra.mxu0 0
    %936 = vmatpush.bf16.xpose.msra.mxu0 0
    %937 = vmatpush.bf16.xpose.msra.mxu0 %v633
    %938 = vmatpush.bf16.xpose.msra.mxu0 %v609
    %939 = vmatpush.bf16.xpose.msra.mxu0 %v585
    %940 = vmatpush.bf16.xpose.msra.mxu0 %v561
    %941 = vmatmul.bf16.gmra.mxu0 %v225
    %v942 = vpop.f32.mrf.mxu0
    %v943 = vadd.f32 %v930, %v942
    %v944 = vpop.f32.mrf.mxu0
    %945 = vdwg.mxu0
    %946 = vmatpush.bf16.xpose.msra.mxu0 0
    %947 = vmatpush.bf16.xpose.msra.mxu0 0
    %948 = vmatpush.bf16.xpose.msra.mxu0 0
    %949 = vmatpush.bf16.xpose.msra.mxu0 0
    %950 = vmatpush.bf16.xpose.msra.mxu0 %v634
    %951 = vmatpush.bf16.xpose.msra.mxu0 %v610
    %952 = vmatpush.bf16.xpose.msra.mxu0 %v586
    %953 = vmatpush.bf16.xpose.msra.mxu0 %v562
    %954 = vmatmul.bf16.gmra.mxu0 %v226
    %v955 = vpop.f32.mrf.mxu0
    %v956 = vadd.f32 %v943, %v955
    %v957 = vpop.f32.mrf.mxu0
    %958 = vdwg.mxu0
    %959 = vmatpush.bf16.xpose.msra.mxu0 0
    %960 = vmatpush.bf16.xpose.msra.mxu0 0
    %961 = vmatpush.bf16.xpose.msra.mxu0 0
    %962 = vmatpush.bf16.xpose.msra.mxu0 0
    %963 = vmatpush.bf16.xpose.msra.mxu0 %v635
    %964 = vmatpush.bf16.xpose.msra.mxu0 %v611
    %965 = vmatpush.bf16.xpose.msra.mxu0 %v587
    %966 = vmatpush.bf16.xpose.msra.mxu0 %v563
    %967 = vmatmul.bf16.gmra.mxu0 %v227
    %v968 = vpop.f32.mrf.mxu0
    %v969 = vadd.f32 %v956, %v968
    %v970 = vpop.f32.mrf.mxu0
    %971 = vdwg.mxu0
    %972 = vmatpush.bf16.xpose.msra.mxu0 0
    %973 = vmatpush.bf16.xpose.msra.mxu0 0
    %974 = vmatpush.bf16.xpose.msra.mxu0 0
    %975 = vmatpush.bf16.xpose.msra.mxu0 0
    %976 = vmatpush.bf16.xpose.msra.mxu0 %v636
    %977 = vmatpush.bf16.xpose.msra.mxu0 %v612
    %978 = vmatpush.bf16.xpose.msra.mxu0 %v588
    %979 = vmatpush.bf16.xpose.msra.mxu0 %v564
    %980 = vmatmul.bf16.gmra.mxu0 %v228
    %v981 = vpop.f32.mrf.mxu0
    %v982 = vadd.f32 %v969, %v981
    %v983 = vpop.f32.mrf.mxu0
    %984 = vdwg.mxu0
    %985 = vmatpush.bf16.xpose.msra.mxu0 0
    %986 = vmatpush.bf16.xpose.msra.mxu0 0
    %987 = vmatpush.bf16.xpose.msra.mxu0 0
    %988 = vmatpush.bf16.xpose.msra.mxu0 0
    %989 = vmatpush.bf16.xpose.msra.mxu0 %v637
    %990 = vmatpush.bf16.xpose.msra.mxu0 %v613
    %991 = vmatpush.bf16.xpose.msra.mxu0 %v589
    %992 = vmatpush.bf16.xpose.msra.mxu0 %v565
    %993 = vmatmul.bf16.gmra.mxu0 %v229
    %v994 = vpop.f32.mrf.mxu0
    %v995 = vadd.f32 %v982, %v994
    %v996 = vpop.f32.mrf.mxu0
    %997 = vdwg.mxu0
    %998 = vmatpush.bf16.xpose.msra.mxu0 0
    %999 = vmatpush.bf16.xpose.msra.mxu0 0
    %1000 = vmatpush.bf16.xpose.msra.mxu0 0
    %1001 = vmatpush.bf16.xpose.msra.mxu0 0
    %1002 = vmatpush.bf16.xpose.msra.mxu0 %v638
    %1003 = vmatpush.bf16.xpose.msra.mxu0 %v614
    %1004 = vmatpush.bf16.xpose.msra.mxu0 %v590
    %1005 = vmatpush.bf16.xpose.msra.mxu0 %v566
    %1006 = vmatmul.bf16.gmra.mxu0 %v230
    %v1007 = vpop.f32.mrf.mxu0
    %v1008 = vadd.f32 %v995, %v1007
    %v1009 = vpop.f32.mrf.mxu0
    %1010 = vdwg.mxu0
    %1011 = vmatpush.bf16.xpose.msra.mxu0 0
    %1012 = vmatpush.bf16.xpose.msra.mxu0 0
    %1013 = vmatpush.bf16.xpose.msra.mxu0 0
    %1014 = vmatpush.bf16.xpose.msra.mxu0 0
    %1015 = vmatpush.bf16.xpose.msra.mxu0 %v639
    %1016 = vmatpush.bf16.xpose.msra.mxu0 %v615
    %1017 = vmatpush.bf16.xpose.msra.mxu0 %v591
    %1018 = vmatpush.bf16.xpose.msra.mxu0 %v567
    %1019 = vmatmul.bf16.gmra.mxu0 %v231
    %v1020 = vpop.f32.mrf.mxu0
    %v1021 = vadd.f32 %v1008, %v1020
    %v1022 = vpop.f32.mrf.mxu0
    %1023 = vdwg.mxu0
    %1024 = vmatpush.bf16.xpose.msra.mxu0 0
    %1025 = vmatpush.bf16.xpose.msra.mxu0 0
    %1026 = vmatpush.bf16.xpose.msra.mxu0 0
    %1027 = vmatpush.bf16.xpose.msra.mxu0 0
    %1028 = vmatpush.bf16.xpose.msra.mxu0 %v640
    %1029 = vmatpush.bf16.xpose.msra.mxu0 %v616
    %1030 = vmatpush.bf16.xpose.msra.mxu0 %v592
    %1031 = vmatpush.bf16.xpose.msra.mxu0 %v568
    %1032 = vmatmul.bf16.gmra.mxu0 %v232
    %v1033 = vpop.f32.mrf.mxu0
    %v1034 = vadd.f32 %v1021, %v1033
    %v1035 = vpop.f32.mrf.mxu0
    %1036 = vdwg.mxu0
    %1037 = vmatpush.bf16.xpose.msra.mxu0 0
    %1038 = vmatpush.bf16.xpose.msra.mxu0 0
    %1039 = vmatpush.bf16.xpose.msra.mxu0 0
    %1040 = vmatpush.bf16.xpose.msra.mxu0 0
    %1041 = vmatpush.bf16.xpose.msra.mxu0 %v641
    %1042 = vmatpush.bf16.xpose.msra.mxu0 %v617
    %1043 = vmatpush.bf16.xpose.msra.mxu0 %v593
    %1044 = vmatpush.bf16.xpose.msra.mxu0 %v569
    %1045 = vmatmul.bf16.gmra.mxu0 %v233
    %v1046 = vpop.f32.mrf.mxu0
    %v1047 = vadd.f32 %v1034, %v1046
    %v1048 = vpop.f32.mrf.mxu0
    %1049 = vdwg.mxu0
    %vm1050 = vcmp.gt.f32.partialorder %v1047, 0.0
    %v1051 = vadd.f32 %v1047, 3.0
    %v1052 = vmin.f32 %v1051, 6.0
    %v1053 = vmul.f32 %v1047, %v1052
    %v1054 = vmul.f32 %v1053, 0.16666667
    %v1055 = vsel %vm1050, %v1054, 0.0
    %v1056 = vld [vmem:[#allocation7] sm:$0xff]
    %v1057 = vld [vmem:[#allocation7 + $0x8] sm:$0xff]
    %v1058 = vld [vmem:[#allocation7 + $0x10] sm:$0xff]
    %v1059 = vld [vmem:[#allocation7 + $0x18] sm:$0xff]
    %v1060 = vld [vmem:[#allocation7 + $0x20] sm:$0xff]
    %v1061 = vld [vmem:[#allocation7 + $0x28] sm:$0xff]
    %v1062 = vld [vmem:[#allocation7 + $0x30] sm:$0xff]
    %v1063 = vld [vmem:[#allocation7 + $0x38] sm:$0xff]
    %v1064 = vperm.slane %v172, 1
    %vm1065 = vcmask 523264
    %v1067 = vsel %vm1065, %v1055, 0
    %1069 = vmatpush.msra.mxu0 0.0
    %1070 = vmatpush.msra.mxu0 0.0
    %1071 = vmatpush.msra.mxu0 0.0
    %1072 = vmatpush.msra.mxu0 0.0
    %1073 = vmatpush.msra.mxu0 0.0
    %1074 = vmatpush.msra.mxu0 0.0
    %1075 = vmatpush.msra.mxu0 0.0
    %1076 = vmatpush.msra.mxu0 0.0
    %1077 = vmatpush.msra.mxu0 %v1063
    %1078 = vmatpush.msra.mxu0 %v1062
    %1079 = vmatpush.msra.mxu0 %v1061
    %1080 = vmatpush.msra.mxu0 %v1060
    %1081 = vmatpush.msra.mxu0 %v1059
    %1082 = vmatpush.msra.mxu0 %v1058
    %1083 = vmatpush.msra.mxu0 %v1057
    %1084 = vmatpush.msra.mxu0 %v1056
    %1085 = vmatmul.f32.gmra.mxu0 %v1067
    %v1086 = vpop.f32.mrf.mxu0
    %v1087 = vadd.f32 %v1064, %v1086
    %1088 = vdwg.mxu0
    %1089 = vst [vmem:[#allocation8] sm:$0xff] %v1087
    // Predicated region
    $region30: #{tpu_custom_call.1} parent=1 // pred_check
      _
    $region31: #{tpu_custom_call.1} parent=1 // pred_check_branch
      %1091 = sbr.rel (0) target = $region33
    $region32: #{tpu_custom_call.1} parent=1 // pred_region
      %1093 = vsyncadd [#allocation4], 0
      %s1095 = sshll.u32 [#allocation8], 4
      %s1096 = int_to_ptr.vmem [resolvable:$true] %s1095
      %s1097 = sshll.u32 %s4, 4
      %s1098 = int_to_ptr.hbm [resolvable:$true] %s1097
      %1100 = dma.vmem_to_hbm [thread:$0]  %s1096, 128, %s1098, [#allocation4]
    $region33: #{tpu_custom_call.1} parent=1 // pred_fallthru
      _
    // Predicated region
    $region34: #{tpu_custom_call.1} parent=1 // pred_check
      _
    $region35: #{tpu_custom_call.1} parent=1 // pred_check_branch
      %1102 = sbr.rel (0) target = $region37
    $region36: #{tpu_custom_call.1} parent=1 // pred_region
      %1104 = dma.done [#allocation4], 128
    $region37: #{tpu_custom_call.1} parent=1 // pred_fallthru
      _
    %1105 = vsyncpa [#allocation3], 1
    %1106 = vsyncpa [#allocation6], 1
    %1107 = vsyncpa [#allocation4], 1

</llo_original>
